<compile_context>
chip_gen: v6e
topology: v6e:2x2x1
jax: 0.10.0
libtpu: 0.0.40
codegen_flags: <defaults>
</compile_context>

<pallas_src>
import jax
import jax.numpy as jnp
from jax import lax
from jax.experimental import pallas as pl
from jax.experimental.pallas import tpu as pltpu


# Tap ordering shared by weights, masks and the kernel (row-major over the 3x3 window).
TAPS = tuple((dy, dx) for dy in (-1, 0, 1) for dx in (-1, 0, 1))


def _round_up(x, m):
    return (x + m - 1) // m * m


def _make_conv_block_kernel(H, W, NB, Cp_in, Cp_out, Cout):
    """Fused (conv3x3 + BN + ReLU) x2 on NB packed images, (C, NB*HW) lane layout."""
    HW = H * W

    def _im2col_image(src_f32, masks, cols_ref, cp, lane_off):
        # src_f32: (cp, HW) f32 value for ONE image.  Writes the 9 rolled+masked copies
        # (cast to bf16 at the store — the MXU operand) into cols_ref at [k*cp, lane_off].
        for k, (dy, dx) in enumerate(TAPS):
            shift = (-(dy * W + dx)) % HW
            shifted = pltpu.roll(src_f32, shift, 1) if shift else src_f32
            masked = shifted * masks[k:k + 1, :]           # f32; mask is 0/1 -> exact
            cols_ref[k * cp:(k + 1) * cp, lane_off:lane_off + HW] = (
                masked.astype(cols_ref.dtype))

    def kernel(x_ref, w1_ref, b1_ref, w2_ref, b2_ref, masks_ref, o_ref,
               xcol_ref, ycol_ref):
        # x_ref:     (NB, Cp_in, HW) f32  (channels zero-padded to Cp_in in the wrapper)
        # w1_ref:    (Cp_out, 9*Cp_in)  bf16, BN1 scale folded, zero-padded rows/cols
        # b1_ref:    (Cp_out, 1) f32
        # w2_ref:    (Cp_out, 9*Cp_out) bf16, BN2 scale folded
        # b2_ref:    (Cp_out, 1) f32
        # masks_ref: (9, HW) f32 boundary masks per tap
        # o_ref:     (NB, Cout, HW) f32
        # xcol_ref:  (9*Cp_in,  NB*HW) bf16 VMEM scratch (layer-1 im2col)
        # ycol_ref:  (9*Cp_out, NB*HW) bf16 VMEM scratch (layer-2 im2col)
        masks = masks_ref[...]                              # load once per program

        # ---- layer 1: per-image im2col packed along lanes, then one MXU matmul ----
        for b in range(NB):
            _im2col_image(x_ref[b], masks, xcol_ref, Cp_in, b * HW)
        y1 = jnp.dot(w1_ref[...], xcol_ref[...],
                     preferred_element_type=jnp.float32)    # (Cp_out, NB*HW)
        y1 = jnp.maximum(y1 + b1_ref[...], 0.0)             # padded out-rows stay 0

        # ---- layer 2 ----
        for b in range(NB):
            _im2col_image(y1[:, b * HW:(b + 1) * HW], masks, ycol_ref,
                          Cp_out, b * HW)
        y2 = jnp.dot(w2_ref[...], ycol_ref[...],
                     preferred_element_type=jnp.float32)    # (Cp_out, NB*HW)
        y2 = jnp.maximum(y2 + b2_ref[...], 0.0)

        for b in range(NB):
            o_ref[b] = y2[:Cout, b * HW:(b + 1) * HW].astype(o_ref.dtype)

    return kernel


def _tap_masks(H, W):
    """(9, H*W) float32 validity masks (1 inside the image for that tap, else 0)."""
    p = jnp.arange(H * W, dtype=jnp.int32)
    hh, ww = p // W, p % W
    rows = []
    for dy, dx in TAPS:
        valid = ((hh + dy >= 0) & (hh + dy < H) & (ww + dx >= 0) & (ww + dx < W))
        rows.append(valid.astype(jnp.float32))
    return jnp.stack(rows, axis=0)


def _fold_layer(w_hwio, scale, bias, cp_in, cp_out):
    """Fold BN scale into the conv weight; pad channels to the aligned slab sizes;
    reshape to (cp_out, 9*cp_in) bf16 matmul form (tap-major, channel-minor K)."""
    _, _, cin, cout = w_hwio.shape
    w = jnp.transpose(w_hwio * scale, (3, 0, 1, 2))           # (cout, 3, 3, cin)
    w = jnp.pad(w, ((0, cp_out - cout), (0, 0), (0, 0), (0, cp_in - cin)))
    w = w.reshape(cp_out, 9 * cp_in)
    b = jnp.pad(bias, (0, cp_out - cout)).reshape(cp_out, 1)
    return w.astype(jnp.bfloat16), b.astype(jnp.float32)


def _pick_nb(N, Cp_in, Cp_out, HW):
    """Images packed per grid program: largest divisor of N that keeps >= 2 grid
    programs when N >= 2 (v7x megacore) and keeps the bf16 im2col scratch bounded."""
    best = 1
    for d in range(1, N + 1):
        if N % d:
            continue
        if N >= 2 and N // d < 2:
            continue
        if 9 * (Cp_in + Cp_out) * d * HW * 2 > 24 * 2**20:
            continue
        best = d
    return best


@jax.jit
def conv_block_forward(x_nchw, params):
    """Full ConvBlock forward.  Input/output are NCHW to match PyTorch."""
    (w1, s1, b1), (w2, s2, b2) = params
    N, Cin, H, W = x_nchw.shape
    Cout = w1.shape[-1]
    HW = H * W
    Cp_in = _round_up(Cin, 8)
    Cp_out = _round_up(Cout, 8)
    NB = _pick_nb(N, Cp_in, Cp_out, HW)

    x_flat = x_nchw.reshape(N, Cin, HW)             # free reshape: NCHW is contiguous
    if Cp_in != Cin:                                # zero-pad channels -> aligned slabs
        x_flat = jnp.pad(x_flat, ((0, 0), (0, Cp_in - Cin), (0, 0)))
    w1m, b1v = _fold_layer(w1, s1, b1, Cp_in, Cp_out)
    w2m, b2v = _fold_layer(w2, s2, b2, Cp_out, Cp_out)
    masks = _tap_masks(H, W)

    kernel = _make_conv_block_kernel(H, W, NB, Cp_in, Cp_out, Cout)

    flops = 2 * N * HW * 9 * (Cp_in * Cp_out + Cp_out * Cp_out)
    bytes_accessed = (4 * N * Cp_in * HW + 4 * N * Cout * HW
                      + 2 * (w1m.size + w2m.size) + 4 * (b1v.size + b2v.size)
                      + 4 * masks.size)

    # VMEM budget: double-buffered pipelined operands + persistent scratch, with headroom.
    # Cap at 56 MiB (v7x has only 64 MiB per TensorCore — leave room for Mosaic scratch).
    blk_bytes = (NB * Cp_in * HW * 4 + NB * Cout * HW * 4 + masks.size * 4
                 + w1m.size * 2 + w2m.size * 2 + (b1v.size + b2v.size) * 4)
    scratch_bytes = 9 * (Cp_in + Cp_out) * NB * HW * 2
    vmem_limit = int(min(56 * 2**20,
                         max(16 * 2**20, 4 * (2 * blk_bytes + scratch_bytes))))

    out_flat = pl.pallas_call(
        kernel,
        out_shape=jax.ShapeDtypeStruct((N, Cout, HW), jnp.float32),
        grid_spec=pltpu.PrefetchScalarGridSpec(
            num_scalar_prefetch=0,
            grid=(N // NB,),
            in_specs=[
                pl.BlockSpec((NB, Cp_in, HW), lambda n: (n, 0, 0)),
                pl.BlockSpec((Cp_out, 9 * Cp_in), lambda n: (0, 0)),
                pl.BlockSpec((Cp_out, 1), lambda n: (0, 0)),
                pl.BlockSpec((Cp_out, 9 * Cp_out), lambda n: (0, 0)),
                pl.BlockSpec((Cp_out, 1), lambda n: (0, 0)),
                pl.BlockSpec((9, HW), lambda n: (0, 0)),
            ],
            out_specs=pl.BlockSpec((NB, Cout, HW), lambda n: (n, 0, 0)),
            scratch_shapes=[
                pltpu.VMEM((9 * Cp_in, NB * HW), jnp.bfloat16),   # im2col buf, layer 1
                pltpu.VMEM((9 * Cp_out, NB * HW), jnp.bfloat16),  # im2col buf, layer 2
            ],
        ),
        compiler_params=pltpu.CompilerParams(
            dimension_semantics=("parallel",),
            vmem_limit_bytes=vmem_limit,
        ),
        cost_estimate=pl.CostEstimate(
            flops=flops, transcendentals=0, bytes_accessed=bytes_accessed),
    )(x_flat, w1m, b1v, w2m, b2v, masks)

    return out_flat.reshape(N, Cout, H, W)          # free reshape back to NCHW


def fold_bn(conv_bias, gamma, beta, running_mean, running_var, eps=1e-5):
    """Fold conv bias + BN(running stats) into per-channel scale/bias."""
    scale = gamma / jnp.sqrt(running_var + eps)
    bias = beta + (conv_bias - running_mean) * scale
    return scale, bias


def init_params(key, in_channels, out_channels):
    k1, k2, k3, k4, k5, k6 = jax.random.split(key, 6)
    # Conv weights, HWIO, small deterministic init.
    w1 = jax.random.normal(k1, (3, 3, in_channels, out_channels), jnp.float32) * 0.1
    cb1 = jax.random.normal(k2, (out_channels,), jnp.float32) * 0.1
    w2 = jax.random.normal(k3, (3, 3, out_channels, out_channels), jnp.float32) * 0.1
    cb2 = jax.random.normal(k4, (out_channels,), jnp.float32) * 0.1
    # BN affine params (deterministic); running stats at PyTorch init values.
    g1 = 1.0 + 0.1 * jax.random.normal(k5, (out_channels,), jnp.float32)
    be1 = 0.1 * jax.random.normal(k6, (out_channels,), jnp.float32)
    g2 = jnp.ones((out_channels,), jnp.float32)
    be2 = jnp.zeros((out_channels,), jnp.float32)
    rm = jnp.zeros((out_channels,), jnp.float32)
    rv = jnp.ones((out_channels,), jnp.float32)
    s1, b1 = fold_bn(cb1, g1, be1, rm, rv)
    s2, b2 = fold_bn(cb2, g2, be2, rm, rv)
    return ((w1, s1, b1), (w2, s2, b2)), (w1, cb1, w2, cb2, g1, be1, g2, be2, rm, rv)


def _reference_forward(x_nchw, raw):
    """Pure-JAX f32 reference (lax.conv) for correctness check."""
    w1, cb1, w2, cb2, g1, be1, g2, be2, rm, rv = raw
    eps = 1e-5

    def layer(x, w_hwio, cb, g, be):
        y = lax.conv_general_dilated(
            x, w_hwio, window_strides=(1, 1), padding="SAME",
            dimension_numbers=("NCHW", "HWIO", "NCHW"),
            precision=lax.Precision.HIGHEST)
        y = y + cb[None, :, None, None]
        y = (y - rm[None, :, None, None]) / jnp.sqrt(rv + eps)[None, :, None, None]
        y = y * g[None, :, None, None] + be[None, :, None, None]
        return jnp.maximum(y, 0.0)

    y = layer(x_nchw, w1, cb1, g1, be1)
    return layer(y, w2, cb2, g2, be2)


if __name__ == "__main__":
    key = jax.random.PRNGKey(0)
    k_x, k_p = jax.random.split(key)

    N, Cin, Cout, H, W = 2, 4, 8, 16, 16
    x = jax.random.normal(k_x, (N, Cin, H, W), jnp.float32)

    params, raw = init_params(k_p, Cin, Cout)

    out = conv_block_forward(x, params)
    out = jax.block_until_ready(out)
    assert out.shape == (N, Cout, H, W), out.shape

    ref = jax.block_until_ready(_reference_forward(x, raw))
    err = float(jnp.max(jnp.abs(out - ref)))
    # bf16 MXU operands (f32 accumulation) -> tolerance loosened vs the f32 reference.
    assert jnp.allclose(out, ref, atol=5e-2, rtol=5e-2), err

    print("KERNEL_OK")
</pallas_src>

<mosaic_0001>
module attributes {stable_mosaic.version = 11 : i64} {
  func.func @kernel(%arg0: i32, %arg1: memref<1x8x256xf32, #tpu.memory_space<vmem>>, %arg2: memref<8x72xbf16, #tpu.memory_space<vmem>>, %arg3: memref<8x1xf32, #tpu.memory_space<vmem>>, %arg4: memref<8x72xbf16, #tpu.memory_space<vmem>>, %arg5: memref<8x1xf32, #tpu.memory_space<vmem>>, %arg6: memref<9x256xf32, #tpu.memory_space<vmem>>, %arg7: memref<1x8x256xf32, #tpu.memory_space<vmem>>, %arg8: memref<72x256xbf16, #tpu.memory_space<vmem>>, %arg9: memref<72x256xbf16, #tpu.memory_space<vmem>>) attributes {dimension_semantics = [#tpu.dimension_semantics<parallel>], iteration_bounds = array<i64: 2>, scalar_prefetch = 0 : i64, scratch_operands = 2 : i64, tpu.core_type = #tpu.core_type<tc>, window_params = [{transform_indices = @transform_0, window_bounds = array<i64: 1, 8, 256>}, {pipeline_mode = #tpu.pipeline_mode<synchronous>, transform_indices = @transform_1, window_bounds = array<i64: 8, 72>}, {pipeline_mode = #tpu.pipeline_mode<synchronous>, transform_indices = @transform_2, window_bounds = array<i64: 8, 1>}, {pipeline_mode = #tpu.pipeline_mode<synchronous>, transform_indices = @transform_3, window_bounds = array<i64: 8, 72>}, {pipeline_mode = #tpu.pipeline_mode<synchronous>, transform_indices = @transform_4, window_bounds = array<i64: 8, 1>}, {pipeline_mode = #tpu.pipeline_mode<synchronous>, transform_indices = @transform_5, window_bounds = array<i64: 9, 256>}, {transform_indices = @transform_6, window_bounds = array<i64: 1, 8, 256>}]} {
    %c0 = arith.constant 0 : index
    %c0_0 = arith.constant 0 : index
    %0 = vector.load %arg6[%c0, %c0_0] : memref<9x256xf32, #tpu.memory_space<vmem>>, vector<9x256xf32>
    %c0_1 = arith.constant 0 : index
    %c0_2 = arith.constant 0 : index
    %c0_3 = arith.constant 0 : index
    %1 = vector.load %arg1[%c0_1, %c0_2, %c0_3] : memref<1x8x256xf32, #tpu.memory_space<vmem>>, vector<1x8x256xf32>
    %2 = vector.shape_cast %1 : vector<1x8x256xf32> to vector<8x256xf32>
    %c17_i32 = arith.constant 17 : i32
    %3 = tpu.dynamic_rotate %2 by %c17_i32 dim 1 : vector<8x256xf32>, i32 -> vector<8x256xf32>
    %4 = vector.extract_strided_slice %0 {offsets = [0, 0], sizes = [1, 256], strides = [1, 1]} : vector<9x256xf32> to vector<1x256xf32>
    %5 = vector.broadcast %4 : vector<1x256xf32> to vector<8x256xf32>
    %6 = arith.mulf %3, %5 : vector<8x256xf32>
    %7 = arith.truncf %6 : vector<8x256xf32> to vector<8x256xbf16>
    %c0_4 = arith.constant 0 : index
    %c0_5 = arith.constant 0 : index
    %8 = vector.load %arg8[%c0_4, %c0_5] : memref<72x256xbf16, #tpu.memory_space<vmem>>, vector<8x256xbf16>
    tpu.vector_store %arg8[%c0_4, %c0_5], %7 {strides = array<i32>} : memref<72x256xbf16, #tpu.memory_space<vmem>>, vector<8x256xbf16>,
    %c16_i32 = arith.constant 16 : i32
    %9 = tpu.dynamic_rotate %2 by %c16_i32 dim 1 : vector<8x256xf32>, i32 -> vector<8x256xf32>
    %10 = vector.extract_strided_slice %0 {offsets = [1, 0], sizes = [1, 256], strides = [1, 1]} : vector<9x256xf32> to vector<1x256xf32>
    %11 = vector.broadcast %10 : vector<1x256xf32> to vector<8x256xf32>
    %12 = arith.mulf %9, %11 : vector<8x256xf32>
    %13 = arith.truncf %12 : vector<8x256xf32> to vector<8x256xbf16>
    %c8 = arith.constant 8 : index
    %c0_6 = arith.constant 0 : index
    %14 = vector.load %arg8[%c8, %c0_6] : memref<72x256xbf16, #tpu.memory_space<vmem>>, vector<8x256xbf16>
    tpu.vector_store %arg8[%c8, %c0_6], %13 {strides = array<i32>} : memref<72x256xbf16, #tpu.memory_space<vmem>>, vector<8x256xbf16>,
    %c15_i32 = arith.constant 15 : i32
    %15 = tpu.dynamic_rotate %2 by %c15_i32 dim 1 : vector<8x256xf32>, i32 -> vector<8x256xf32>
    %16 = vector.extract_strided_slice %0 {offsets = [2, 0], sizes = [1, 256], strides = [1, 1]} : vector<9x256xf32> to vector<1x256xf32>
    %17 = vector.broadcast %16 : vector<1x256xf32> to vector<8x256xf32>
    %18 = arith.mulf %15, %17 : vector<8x256xf32>
    %19 = arith.truncf %18 : vector<8x256xf32> to vector<8x256xbf16>
    %c16 = arith.constant 16 : index
    %c0_7 = arith.constant 0 : index
    %20 = vector.load %arg8[%c16, %c0_7] : memref<72x256xbf16, #tpu.memory_space<vmem>>, vector<8x256xbf16>
    tpu.vector_store %arg8[%c16, %c0_7], %19 {strides = array<i32>} : memref<72x256xbf16, #tpu.memory_space<vmem>>, vector<8x256xbf16>,
    %c1_i32 = arith.constant 1 : i32
    %21 = tpu.dynamic_rotate %2 by %c1_i32 dim 1 : vector<8x256xf32>, i32 -> vector<8x256xf32>
    %22 = vector.extract_strided_slice %0 {offsets = [3, 0], sizes = [1, 256], strides = [1, 1]} : vector<9x256xf32> to vector<1x256xf32>
    %23 = vector.broadcast %22 : vector<1x256xf32> to vector<8x256xf32>
    %24 = arith.mulf %21, %23 : vector<8x256xf32>
    %25 = arith.truncf %24 : vector<8x256xf32> to vector<8x256xbf16>
    %c24 = arith.constant 24 : index
    %c0_8 = arith.constant 0 : index
    %26 = vector.load %arg8[%c24, %c0_8] : memref<72x256xbf16, #tpu.memory_space<vmem>>, vector<8x256xbf16>
    tpu.vector_store %arg8[%c24, %c0_8], %25 {strides = array<i32>} : memref<72x256xbf16, #tpu.memory_space<vmem>>, vector<8x256xbf16>,
    %27 = vector.extract_strided_slice %0 {offsets = [4, 0], sizes = [1, 256], strides = [1, 1]} : vector<9x256xf32> to vector<1x256xf32>
    %28 = vector.broadcast %27 : vector<1x256xf32> to vector<8x256xf32>
    %29 = arith.mulf %2, %28 : vector<8x256xf32>
    %30 = arith.truncf %29 : vector<8x256xf32> to vector<8x256xbf16>
    %c32 = arith.constant 32 : index
    %c0_9 = arith.constant 0 : index
    %31 = vector.load %arg8[%c32, %c0_9] : memref<72x256xbf16, #tpu.memory_space<vmem>>, vector<8x256xbf16>
    tpu.vector_store %arg8[%c32, %c0_9], %30 {strides = array<i32>} : memref<72x256xbf16, #tpu.memory_space<vmem>>, vector<8x256xbf16>,
    %c255_i32 = arith.constant 255 : i32
    %32 = tpu.dynamic_rotate %2 by %c255_i32 dim 1 : vector<8x256xf32>, i32 -> vector<8x256xf32>
    %33 = vector.extract_strided_slice %0 {offsets = [5, 0], sizes = [1, 256], strides = [1, 1]} : vector<9x256xf32> to vector<1x256xf32>
    %34 = vector.broadcast %33 : vector<1x256xf32> to vector<8x256xf32>
    %35 = arith.mulf %32, %34 : vector<8x256xf32>
    %36 = arith.truncf %35 : vector<8x256xf32> to vector<8x256xbf16>
    %c40 = arith.constant 40 : index
    %c0_10 = arith.constant 0 : index
    %37 = vector.load %arg8[%c40, %c0_10] : memref<72x256xbf16, #tpu.memory_space<vmem>>, vector<8x256xbf16>
    tpu.vector_store %arg8[%c40, %c0_10], %36 {strides = array<i32>} : memref<72x256xbf16, #tpu.memory_space<vmem>>, vector<8x256xbf16>,
    %c241_i32 = arith.constant 241 : i32
    %38 = tpu.dynamic_rotate %2 by %c241_i32 dim 1 : vector<8x256xf32>, i32 -> vector<8x256xf32>
    %39 = vector.extract_strided_slice %0 {offsets = [6, 0], sizes = [1, 256], strides = [1, 1]} : vector<9x256xf32> to vector<1x256xf32>
    %40 = vector.broadcast %39 : vector<1x256xf32> to vector<8x256xf32>
    %41 = arith.mulf %38, %40 : vector<8x256xf32>
    %42 = arith.truncf %41 : vector<8x256xf32> to vector<8x256xbf16>
    %c48 = arith.constant 48 : index
    %c0_11 = arith.constant 0 : index
    %43 = vector.load %arg8[%c48, %c0_11] : memref<72x256xbf16, #tpu.memory_space<vmem>>, vector<8x256xbf16>
    tpu.vector_store %arg8[%c48, %c0_11], %42 {strides = array<i32>} : memref<72x256xbf16, #tpu.memory_space<vmem>>, vector<8x256xbf16>,
    %c240_i32 = arith.constant 240 : i32
    %44 = tpu.dynamic_rotate %2 by %c240_i32 dim 1 : vector<8x256xf32>, i32 -> vector<8x256xf32>
    %45 = vector.extract_strided_slice %0 {offsets = [7, 0], sizes = [1, 256], strides = [1, 1]} : vector<9x256xf32> to vector<1x256xf32>
    %46 = vector.broadcast %45 : vector<1x256xf32> to vector<8x256xf32>
    %47 = arith.mulf %44, %46 : vector<8x256xf32>
    %48 = arith.truncf %47 : vector<8x256xf32> to vector<8x256xbf16>
    %c56 = arith.constant 56 : index
    %c0_12 = arith.constant 0 : index
    %49 = vector.load %arg8[%c56, %c0_12] : memref<72x256xbf16, #tpu.memory_space<vmem>>, vector<8x256xbf16>
    tpu.vector_store %arg8[%c56, %c0_12], %48 {strides = array<i32>} : memref<72x256xbf16, #tpu.memory_space<vmem>>, vector<8x256xbf16>,
    %c239_i32 = arith.constant 239 : i32
    %50 = tpu.dynamic_rotate %2 by %c239_i32 dim 1 : vector<8x256xf32>, i32 -> vector<8x256xf32>
    %51 = vector.extract_strided_slice %0 {offsets = [8, 0], sizes = [1, 256], strides = [1, 1]} : vector<9x256xf32> to vector<1x256xf32>
    %52 = vector.broadcast %51 : vector<1x256xf32> to vector<8x256xf32>
    %53 = arith.mulf %50, %52 : vector<8x256xf32>
    %54 = arith.truncf %53 : vector<8x256xf32> to vector<8x256xbf16>
    %c64 = arith.constant 64 : index
    %c0_13 = arith.constant 0 : index
    %55 = vector.load %arg8[%c64, %c0_13] : memref<72x256xbf16, #tpu.memory_space<vmem>>, vector<8x256xbf16>
    tpu.vector_store %arg8[%c64, %c0_13], %54 {strides = array<i32>} : memref<72x256xbf16, #tpu.memory_space<vmem>>, vector<8x256xbf16>,
    %c0_14 = arith.constant 0 : index
    %c0_15 = arith.constant 0 : index
    %56 = vector.load %arg2[%c0_14, %c0_15] : memref<8x72xbf16, #tpu.memory_space<vmem>>, vector<8x72xbf16>
    %c0_16 = arith.constant 0 : index
    %c0_17 = arith.constant 0 : index
    %57 = vector.load %arg8[%c0_16, %c0_17] : memref<72x256xbf16, #tpu.memory_space<vmem>>, vector<72x256xbf16>
    %cst = arith.constant dense<0.000000e+00> : vector<8x256xf32>
    %58 = tpu.matmul %56, %57, %cst {dimension_numbers = #tpu.dot_dimension_numbers<[1], [0], [0], [1], [0, 0, 1, 1], [], []>} : vector<8x72xbf16>, vector<72x256xbf16>, vector<8x256xf32> -> vector<8x256xf32>
    %c0_18 = arith.constant 0 : index
    %c0_19 = arith.constant 0 : index
    %59 = vector.load %arg3[%c0_18, %c0_19] : memref<8x1xf32, #tpu.memory_space<vmem>>, vector<8x1xf32>
    %60 = vector.broadcast %59 : vector<8x1xf32> to vector<8x256xf32>
    %61 = arith.addf %58, %60 : vector<8x256xf32>
    %cst_20 = arith.constant 0.000000e+00 : f32
    %62 = vector.broadcast %cst_20 : f32 to vector<8x256xf32>
    %63 = arith.maximumf %61, %62 : vector<8x256xf32>
    %c17_i32_21 = arith.constant 17 : i32
    %64 = tpu.dynamic_rotate %63 by %c17_i32_21 dim 1 : vector<8x256xf32>, i32 -> vector<8x256xf32>
    %65 = vector.extract_strided_slice %0 {offsets = [0, 0], sizes = [1, 256], strides = [1, 1]} : vector<9x256xf32> to vector<1x256xf32>
    %66 = vector.broadcast %65 : vector<1x256xf32> to vector<8x256xf32>
    %67 = arith.mulf %64, %66 : vector<8x256xf32>
    %68 = arith.truncf %67 : vector<8x256xf32> to vector<8x256xbf16>
    %c0_22 = arith.constant 0 : index
    %c0_23 = arith.constant 0 : index
    %69 = vector.load %arg9[%c0_22, %c0_23] : memref<72x256xbf16, #tpu.memory_space<vmem>>, vector<8x256xbf16>
    tpu.vector_store %arg9[%c0_22, %c0_23], %68 {strides = array<i32>} : memref<72x256xbf16, #tpu.memory_space<vmem>>, vector<8x256xbf16>,
    %c16_i32_24 = arith.constant 16 : i32
    %70 = tpu.dynamic_rotate %63 by %c16_i32_24 dim 1 : vector<8x256xf32>, i32 -> vector<8x256xf32>
    %71 = vector.extract_strided_slice %0 {offsets = [1, 0], sizes = [1, 256], strides = [1, 1]} : vector<9x256xf32> to vector<1x256xf32>
    %72 = vector.broadcast %71 : vector<1x256xf32> to vector<8x256xf32>
    %73 = arith.mulf %70, %72 : vector<8x256xf32>
    %74 = arith.truncf %73 : vector<8x256xf32> to vector<8x256xbf16>
    %c8_25 = arith.constant 8 : index
    %c0_26 = arith.constant 0 : index
    %75 = vector.load %arg9[%c8_25, %c0_26] : memref<72x256xbf16, #tpu.memory_space<vmem>>, vector<8x256xbf16>
    tpu.vector_store %arg9[%c8_25, %c0_26], %74 {strides = array<i32>} : memref<72x256xbf16, #tpu.memory_space<vmem>>, vector<8x256xbf16>,
    %c15_i32_27 = arith.constant 15 : i32
    %76 = tpu.dynamic_rotate %63 by %c15_i32_27 dim 1 : vector<8x256xf32>, i32 -> vector<8x256xf32>
    %77 = vector.extract_strided_slice %0 {offsets = [2, 0], sizes = [1, 256], strides = [1, 1]} : vector<9x256xf32> to vector<1x256xf32>
    %78 = vector.broadcast %77 : vector<1x256xf32> to vector<8x256xf32>
    %79 = arith.mulf %76, %78 : vector<8x256xf32>
    %80 = arith.truncf %79 : vector<8x256xf32> to vector<8x256xbf16>
    %c16_28 = arith.constant 16 : index
    %c0_29 = arith.constant 0 : index
    %81 = vector.load %arg9[%c16_28, %c0_29] : memref<72x256xbf16, #tpu.memory_space<vmem>>, vector<8x256xbf16>
    tpu.vector_store %arg9[%c16_28, %c0_29], %80 {strides = array<i32>} : memref<72x256xbf16, #tpu.memory_space<vmem>>, vector<8x256xbf16>,
    %c1_i32_30 = arith.constant 1 : i32
    %82 = tpu.dynamic_rotate %63 by %c1_i32_30 dim 1 : vector<8x256xf32>, i32 -> vector<8x256xf32>
    %83 = vector.extract_strided_slice %0 {offsets = [3, 0], sizes = [1, 256], strides = [1, 1]} : vector<9x256xf32> to vector<1x256xf32>
    %84 = vector.broadcast %83 : vector<1x256xf32> to vector<8x256xf32>
    %85 = arith.mulf %82, %84 : vector<8x256xf32>
    %86 = arith.truncf %85 : vector<8x256xf32> to vector<8x256xbf16>
    %c24_31 = arith.constant 24 : index
    %c0_32 = arith.constant 0 : index
    %87 = vector.load %arg9[%c24_31, %c0_32] : memref<72x256xbf16, #tpu.memory_space<vmem>>, vector<8x256xbf16>
    tpu.vector_store %arg9[%c24_31, %c0_32], %86 {strides = array<i32>} : memref<72x256xbf16, #tpu.memory_space<vmem>>, vector<8x256xbf16>,
    %88 = vector.extract_strided_slice %0 {offsets = [4, 0], sizes = [1, 256], strides = [1, 1]} : vector<9x256xf32> to vector<1x256xf32>
    %89 = vector.broadcast %88 : vector<1x256xf32> to vector<8x256xf32>
    %90 = arith.mulf %63, %89 : vector<8x256xf32>
    %91 = arith.truncf %90 : vector<8x256xf32> to vector<8x256xbf16>
    %c32_33 = arith.constant 32 : index
    %c0_34 = arith.constant 0 : index
    %92 = vector.load %arg9[%c32_33, %c0_34] : memref<72x256xbf16, #tpu.memory_space<vmem>>, vector<8x256xbf16>
    tpu.vector_store %arg9[%c32_33, %c0_34], %91 {strides = array<i32>} : memref<72x256xbf16, #tpu.memory_space<vmem>>, vector<8x256xbf16>,
    %c255_i32_35 = arith.constant 255 : i32
    %93 = tpu.dynamic_rotate %63 by %c255_i32_35 dim 1 : vector<8x256xf32>, i32 -> vector<8x256xf32>
    %94 = vector.extract_strided_slice %0 {offsets = [5, 0], sizes = [1, 256], strides = [1, 1]} : vector<9x256xf32> to vector<1x256xf32>
    %95 = vector.broadcast %94 : vector<1x256xf32> to vector<8x256xf32>
    %96 = arith.mulf %93, %95 : vector<8x256xf32>
    %97 = arith.truncf %96 : vector<8x256xf32> to vector<8x256xbf16>
    %c40_36 = arith.constant 40 : index
    %c0_37 = arith.constant 0 : index
    %98 = vector.load %arg9[%c40_36, %c0_37] : memref<72x256xbf16, #tpu.memory_space<vmem>>, vector<8x256xbf16>
    tpu.vector_store %arg9[%c40_36, %c0_37], %97 {strides = array<i32>} : memref<72x256xbf16, #tpu.memory_space<vmem>>, vector<8x256xbf16>,
    %c241_i32_38 = arith.constant 241 : i32
    %99 = tpu.dynamic_rotate %63 by %c241_i32_38 dim 1 : vector<8x256xf32>, i32 -> vector<8x256xf32>
    %100 = vector.extract_strided_slice %0 {offsets = [6, 0], sizes = [1, 256], strides = [1, 1]} : vector<9x256xf32> to vector<1x256xf32>
    %101 = vector.broadcast %100 : vector<1x256xf32> to vector<8x256xf32>
    %102 = arith.mulf %99, %101 : vector<8x256xf32>
    %103 = arith.truncf %102 : vector<8x256xf32> to vector<8x256xbf16>
    %c48_39 = arith.constant 48 : index
    %c0_40 = arith.constant 0 : index
    %104 = vector.load %arg9[%c48_39, %c0_40] : memref<72x256xbf16, #tpu.memory_space<vmem>>, vector<8x256xbf16>
    tpu.vector_store %arg9[%c48_39, %c0_40], %103 {strides = array<i32>} : memref<72x256xbf16, #tpu.memory_space<vmem>>, vector<8x256xbf16>,
    %c240_i32_41 = arith.constant 240 : i32
    %105 = tpu.dynamic_rotate %63 by %c240_i32_41 dim 1 : vector<8x256xf32>, i32 -> vector<8x256xf32>
    %106 = vector.extract_strided_slice %0 {offsets = [7, 0], sizes = [1, 256], strides = [1, 1]} : vector<9x256xf32> to vector<1x256xf32>
    %107 = vector.broadcast %106 : vector<1x256xf32> to vector<8x256xf32>
    %108 = arith.mulf %105, %107 : vector<8x256xf32>
    %109 = arith.truncf %108 : vector<8x256xf32> to vector<8x256xbf16>
    %c56_42 = arith.constant 56 : index
    %c0_43 = arith.constant 0 : index
    %110 = vector.load %arg9[%c56_42, %c0_43] : memref<72x256xbf16, #tpu.memory_space<vmem>>, vector<8x256xbf16>
    tpu.vector_store %arg9[%c56_42, %c0_43], %109 {strides = array<i32>} : memref<72x256xbf16, #tpu.memory_space<vmem>>, vector<8x256xbf16>,
    %c239_i32_44 = arith.constant 239 : i32
    %111 = tpu.dynamic_rotate %63 by %c239_i32_44 dim 1 : vector<8x256xf32>, i32 -> vector<8x256xf32>
    %112 = vector.extract_strided_slice %0 {offsets = [8, 0], sizes = [1, 256], strides = [1, 1]} : vector<9x256xf32> to vector<1x256xf32>
    %113 = vector.broadcast %112 : vector<1x256xf32> to vector<8x256xf32>
    %114 = arith.mulf %111, %113 : vector<8x256xf32>
    %115 = arith.truncf %114 : vector<8x256xf32> to vector<8x256xbf16>
    %c64_45 = arith.constant 64 : index
    %c0_46 = arith.constant 0 : index
    %116 = vector.load %arg9[%c64_45, %c0_46] : memref<72x256xbf16, #tpu.memory_space<vmem>>, vector<8x256xbf16>
    tpu.vector_store %arg9[%c64_45, %c0_46], %115 {strides = array<i32>} : memref<72x256xbf16, #tpu.memory_space<vmem>>, vector<8x256xbf16>,
    %c0_47 = arith.constant 0 : index
    %c0_48 = arith.constant 0 : index
    %117 = vector.load %arg4[%c0_47, %c0_48] : memref<8x72xbf16, #tpu.memory_space<vmem>>, vector<8x72xbf16>
    %c0_49 = arith.constant 0 : index
    %c0_50 = arith.constant 0 : index
    %118 = vector.load %arg9[%c0_49, %c0_50] : memref<72x256xbf16, #tpu.memory_space<vmem>>, vector<72x256xbf16>
    %cst_51 = arith.constant dense<0.000000e+00> : vector<8x256xf32>
    %119 = tpu.matmul %117, %118, %cst_51 {dimension_numbers = #tpu.dot_dimension_numbers<[1], [0], [0], [1], [0, 0, 1, 1], [], []>} : vector<8x72xbf16>, vector<72x256xbf16>, vector<8x256xf32> -> vector<8x256xf32>
    %c0_52 = arith.constant 0 : index
    %c0_53 = arith.constant 0 : index
    %120 = vector.load %arg5[%c0_52, %c0_53] : memref<8x1xf32, #tpu.memory_space<vmem>>, vector<8x1xf32>
    %121 = vector.broadcast %120 : vector<8x1xf32> to vector<8x256xf32>
    %122 = arith.addf %119, %121 : vector<8x256xf32>
    %cst_54 = arith.constant 0.000000e+00 : f32
    %123 = vector.broadcast %cst_54 : f32 to vector<8x256xf32>
    %124 = arith.maximumf %122, %123 : vector<8x256xf32>
    %c0_55 = arith.constant 0 : index
    %c0_56 = arith.constant 0 : index
    %c0_57 = arith.constant 0 : index
    %125 = vector.load %arg7[%c0_55, %c0_56, %c0_57] : memref<1x8x256xf32, #tpu.memory_space<vmem>>, vector<1x8x256xf32>
    %126 = vector.shape_cast %125 : vector<1x8x256xf32> to vector<8x256xf32>
    %127 = vector.shape_cast %124 : vector<8x256xf32> to vector<1x8x256xf32>
    tpu.vector_store %arg7[%c0_55, %c0_56, %c0_57], %127 {strides = array<i32>} : memref<1x8x256xf32, #tpu.memory_space<vmem>>, vector<1x8x256xf32>,
    return
  }
  func.func @transform_0(%arg0: i32) -> (i32, i32, i32) {
    %c0_i32 = arith.constant 0 : i32
    %c0_i32_0 = arith.constant 0 : i32
    %c0_i32_1 = arith.constant 0 : i32
    return %arg0, %c0_i32, %c0_i32_0 : i32, i32, i32
  }
  func.func @transform_1(%arg0: i32) -> (i32, i32) {
    %c0_i32 = arith.constant 0 : i32
    %c0_i32_0 = arith.constant 0 : i32
    %c0_i32_1 = arith.constant 0 : i32
    return %c0_i32, %c0_i32_0 : i32, i32
  }
  func.func @transform_2(%arg0: i32) -> (i32, i32) {
    %c0_i32 = arith.constant 0 : i32
    %c0_i32_0 = arith.constant 0 : i32
    %c0_i32_1 = arith.constant 0 : i32
    return %c0_i32, %c0_i32_0 : i32, i32
  }
  func.func @transform_3(%arg0: i32) -> (i32, i32) {
    %c0_i32 = arith.constant 0 : i32
    %c0_i32_0 = arith.constant 0 : i32
    %c0_i32_1 = arith.constant 0 : i32
    return %c0_i32, %c0_i32_0 : i32, i32
  }
  func.func @transform_4(%arg0: i32) -> (i32, i32) {
    %c0_i32 = arith.constant 0 : i32
    %c0_i32_0 = arith.constant 0 : i32
    %c0_i32_1 = arith.constant 0 : i32
    return %c0_i32, %c0_i32_0 : i32, i32
  }
  func.func @transform_5(%arg0: i32) -> (i32, i32) {
    %c0_i32 = arith.constant 0 : i32
    %c0_i32_0 = arith.constant 0 : i32
    %c0_i32_1 = arith.constant 0 : i32
    return %c0_i32, %c0_i32_0 : i32, i32
  }
  func.func @transform_6(%arg0: i32) -> (i32, i32, i32) {
    %c0_i32 = arith.constant 0 : i32
    %c0_i32_0 = arith.constant 0 : i32
    %c0_i32_1 = arith.constant 0 : i32
    return %arg0, %c0_i32, %c0_i32_0 : i32, i32, i32
  }
}

</mosaic_0001>

<llo_original>
// kernel: conv_block_forward.1
$region0: #{conv_block_forward.1}
  #allocation0 [shape = 'u32[]', space=smem, size = 0x4, offset = 0x4, fixed_abs, tag = 'smem constant byte address 0x4 - core index']
  #allocation1 [shape = 'u32[144,128]{1,0:T(1,128)}', space=vmem, size = 0x12000, scoped, tag = 'internal scratch']
  #allocation2 [shape = 'bf16[72,256]{1,0:T(8,128)(2,1)}', space=vmem, size = 0x9000, scoped, tag = 'scratch operand']
  #allocation3 [shape = 'bf16[72,256]{1,0:T(8,128)(2,1)}', space=vmem, size = 0x9000, scoped, tag = 'scratch operand']
  %s0 = inlined_call_operand.vmem [shape: f32[2,8,256], index: 0, kind: input, shape index: {}]
  %s1 = inlined_call_operand.vmem [shape: bf16[8,72], index: 1, kind: input, shape index: {}]
  %s2 = inlined_call_operand.vmem [shape: f32[8,1], index: 2, kind: input, shape index: {}]
  %s3 = inlined_call_operand.vmem [shape: bf16[8,72], index: 3, kind: input, shape index: {}]
  %s4 = inlined_call_operand.vmem [shape: f32[8,1], index: 4, kind: input, shape index: {}]
  %s5 = inlined_call_operand.vmem [shape: f32[9,256], index: 5, kind: input, shape index: {}]
  %s6 = inlined_call_operand.vmem [shape: f32[2,8,256], index: 6, kind: output, shape index: {}]
  %s7 = sld [smem:[#allocation0]]
  $region57: #{conv_block_forward.1} parent=0
    _
  %s9 = ssub.s32 1, %s7
  %s10 = scalar_select 0, %s9, %s7
  loop: start=0, step=1, limit=4
  $region2: #{conv_block_forward.1} parent=0 // loop_pre_header
    _
  $region3: #{conv_block_forward.1} parent=0 // loop_header
    %s12 = sphi 0, %s16
    %p13 = scmp.ge.s32.totalorder %s12, 4
    %s22 = sphi 0, %s24
    %s25 = sphi 0, %s22
    %s26 = sphi 0, %s25
    %s42 = sphi 0, %s26
    %s46 = sphi 0, %s46
    %s48 = sphi 0, %s46
    %s49 = sphi 0, %s48
    %s63 = sphi 0, %s49
    %s67 = sphi 0, %s67
    %s69 = sphi 0, %s67
    %s70 = sphi 0, %s69
    %s84 = sphi 0, %s70
    %s88 = sphi 0, %s88
    %s90 = sphi 0, %s88
    %s91 = sphi 0, %s90
    %s105 = sphi 0, %s91
    %s109 = sphi 0, %s109
    %s111 = sphi 0, %s109
    %s112 = sphi 0, %s111
    %s126 = sphi 0, %s112
    %s130 = sphi 0, %s130
    %s132 = sphi 0, %s130
    %s133 = sphi 0, %s132
    %s147 = sphi 0, %s133
    %s153 = sphi 0, %s155
    %s156 = sphi 0, %s153
    %s157 = sphi 0, %s156
    %s173 = sphi 0, %s157
  $region4: #{conv_block_forward.1} parent=0 // loop_header_branch
    %15 = sbr.rel (%p13) target = $region8
  $region5: #{conv_block_forward.1} parent=0 // loop_body
    %s17 = ssub.s32 %s12, 1
    %s18 = ssub.s32 %s12, 2
    %s19 = sadd.s32 %s12, 1
    %s20 = ssub.s32 %s12, %s19
    %p21 = scmp.eq.s32.totalorder %s20, 0
    %s23 = sadd.s32 %s22, 1
    %s24 = scalar_select %p21, %s22, %s23
    %p27 = pneg %p21
    %p28 = scmp.eq.s32.totalorder %s12, 1
    %p29 = por %p27, %p28
    %p30 = scmp.ne.s32.totalorder %s22, %s25
    %p31 = scmp.eq.s32.totalorder %s12, 0
    %p32 = por %p30, %p31
    %p33 = scmp.ne.s32.totalorder %s22, %s25
    %p34 = scmp.eq.s32.totalorder %s17, 1
    %p35 = por %p33, %p34
    %p36 = scmp.ne.s32.totalorder %s25, %s26
    %p37 = scmp.eq.s32.totalorder %s17, 0
    %p38 = por %p36, %p37
    %p39 = scmp.ne.s32.totalorder %s25, %s26
    %p40 = scmp.eq.s32.totalorder %s18, 1
    %p41 = por %p39, %p40
    %p43 = scmp.ne.s32.totalorder %s26, %s42
    %p44 = scmp.eq.s32.totalorder %s18, 0
    %p45 = por %p43, %p44
    %s47 = sadd.s32 %s46, 1
    %p50 = scmp.eq.s32.totalorder %s12, 1
    %p51 = scmp.ne.s32.totalorder %s46, %s48
    %p52 = scmp.eq.s32.totalorder %s12, 0
    %p53 = por %p51, %p52
    %p54 = scmp.ne.s32.totalorder %s46, %s48
    %p55 = scmp.eq.s32.totalorder %s17, 1
    %p56 = por %p54, %p55
    %p57 = scmp.ne.s32.totalorder %s48, %s49
    %p58 = scmp.eq.s32.totalorder %s17, 0
    %p59 = por %p57, %p58
    %p60 = scmp.ne.s32.totalorder %s48, %s49
    %p61 = scmp.eq.s32.totalorder %s18, 1
    %p62 = por %p60, %p61
    %p64 = scmp.ne.s32.totalorder %s49, %s63
    %p65 = scmp.eq.s32.totalorder %s18, 0
    %p66 = por %p64, %p65
    %s68 = sadd.s32 %s67, 1
    %p71 = scmp.eq.s32.totalorder %s12, 1
    %p72 = scmp.ne.s32.totalorder %s67, %s69
    %p73 = scmp.eq.s32.totalorder %s12, 0
    %p74 = por %p72, %p73
    %p75 = scmp.ne.s32.totalorder %s67, %s69
    %p76 = scmp.eq.s32.totalorder %s17, 1
    %p77 = por %p75, %p76
    %p78 = scmp.ne.s32.totalorder %s69, %s70
    %p79 = scmp.eq.s32.totalorder %s17, 0
    %p80 = por %p78, %p79
    %p81 = scmp.ne.s32.totalorder %s69, %s70
    %p82 = scmp.eq.s32.totalorder %s18, 1
    %p83 = por %p81, %p82
    %p85 = scmp.ne.s32.totalorder %s70, %s84
    %p86 = scmp.eq.s32.totalorder %s18, 0
    %p87 = por %p85, %p86
    %s89 = sadd.s32 %s88, 1
    %p92 = scmp.eq.s32.totalorder %s12, 1
    %p93 = scmp.ne.s32.totalorder %s88, %s90
    %p94 = scmp.eq.s32.totalorder %s12, 0
    %p95 = por %p93, %p94
    %p96 = scmp.ne.s32.totalorder %s88, %s90
    %p97 = scmp.eq.s32.totalorder %s17, 1
    %p98 = por %p96, %p97
    %p99 = scmp.ne.s32.totalorder %s90, %s91
    %p100 = scmp.eq.s32.totalorder %s17, 0
    %p101 = por %p99, %p100
    %p102 = scmp.ne.s32.totalorder %s90, %s91
    %p103 = scmp.eq.s32.totalorder %s18, 1
    %p104 = por %p102, %p103
    %p106 = scmp.ne.s32.totalorder %s91, %s105
    %p107 = scmp.eq.s32.totalorder %s18, 0
    %p108 = por %p106, %p107
    %s110 = sadd.s32 %s109, 1
    %p113 = scmp.eq.s32.totalorder %s12, 1
    %p114 = scmp.ne.s32.totalorder %s109, %s111
    %p115 = scmp.eq.s32.totalorder %s12, 0
    %p116 = por %p114, %p115
    %p117 = scmp.ne.s32.totalorder %s109, %s111
    %p118 = scmp.eq.s32.totalorder %s17, 1
    %p119 = por %p117, %p118
    %p120 = scmp.ne.s32.totalorder %s111, %s112
    %p121 = scmp.eq.s32.totalorder %s17, 0
    %p122 = por %p120, %p121
    %p123 = scmp.ne.s32.totalorder %s111, %s112
    %p124 = scmp.eq.s32.totalorder %s18, 1
    %p125 = por %p123, %p124
    %p127 = scmp.ne.s32.totalorder %s112, %s126
    %p128 = scmp.eq.s32.totalorder %s18, 0
    %p129 = por %p127, %p128
    %s131 = sadd.s32 %s130, 1
    %p134 = scmp.eq.s32.totalorder %s12, 1
    %p135 = scmp.ne.s32.totalorder %s130, %s132
    %p136 = scmp.eq.s32.totalorder %s12, 0
    %p137 = por %p135, %p136
    %p138 = scmp.ne.s32.totalorder %s130, %s132
    %p139 = scmp.eq.s32.totalorder %s17, 1
    %p140 = por %p138, %p139
    %p141 = scmp.ne.s32.totalorder %s132, %s133
    %p142 = scmp.eq.s32.totalorder %s17, 0
    %p143 = por %p141, %p142
    %p144 = scmp.ne.s32.totalorder %s132, %s133
    %p145 = scmp.eq.s32.totalorder %s18, 1
    %p146 = por %p144, %p145
    %p148 = scmp.ne.s32.totalorder %s133, %s147
    %p149 = scmp.eq.s32.totalorder %s18, 0
    %p150 = por %p148, %p149
    %s151 = ssub.s32 %s12, %s19
    %p152 = scmp.eq.s32.totalorder %s151, 0
    %s154 = sadd.s32 %s153, 1
    %s155 = scalar_select %p152, %s153, %s154
    %p158 = pneg %p152
    %p159 = scmp.eq.s32.totalorder %s12, 1
    %p160 = por %p158, %p159
    %p161 = scmp.ne.s32.totalorder %s153, %s156
    %p162 = scmp.eq.s32.totalorder %s12, 0
    %p163 = por %p161, %p162
    %p164 = scmp.ne.s32.totalorder %s153, %s156
    %p165 = scmp.eq.s32.totalorder %s17, 1
    %p166 = por %p164, %p165
    %p167 = scmp.ne.s32.totalorder %s156, %s157
    %p168 = scmp.eq.s32.totalorder %s17, 0
    %p169 = por %p167, %p168
    %p170 = scmp.ne.s32.totalorder %s156, %s157
    %p171 = scmp.eq.s32.totalorder %s18, 1
    %p172 = por %p170, %p171
    %p174 = scmp.ne.s32.totalorder %s157, %s173
    %p175 = scmp.eq.s32.totalorder %s18, 0
    %p176 = por %p174, %p175
    %p177 = scmp.le.s32.totalorder 1, %s12
    %p178 = scmp.lt.s32.totalorder %s12, 3
    %p179 = pnand %p177, %p178
    %p180 = pneg %p179
    // Predicated region
    $region9: #{conv_block_forward.1} parent=5 // pred_check
      _
    $region10: #{conv_block_forward.1} parent=5 // pred_check_branch
      %182 = sbr.rel (%p179) target = $region12
    $region11: #{conv_block_forward.1} parent=5 // pred_region
      %s183 = ssub.s32 %s12, 1
      // Predicated region
      $region13: #{conv_block_forward.1} parent=11 // pred_check
        %p184 = pneg %p59
      $region14: #{conv_block_forward.1} parent=11 // pred_check_branch
        %186 = sbr.rel (%p184) target = $region16
      $region15: #{conv_block_forward.1} parent=11 // pred_region
        _
      $region16: #{conv_block_forward.1} parent=11 // pred_fallthru
        _
      // Predicated region
      $region17: #{conv_block_forward.1} parent=11 // pred_check
        %p187 = pneg %p80
      $region18: #{conv_block_forward.1} parent=11 // pred_check_branch
        %189 = sbr.rel (%p187) target = $region20
      $region19: #{conv_block_forward.1} parent=11 // pred_region
        _
      $region20: #{conv_block_forward.1} parent=11 // pred_fallthru
        _
      // Predicated region
      $region21: #{conv_block_forward.1} parent=11 // pred_check
        %p190 = pneg %p101
      $region22: #{conv_block_forward.1} parent=11 // pred_check_branch
        %192 = sbr.rel (%p190) target = $region24
      $region23: #{conv_block_forward.1} parent=11 // pred_region
        _
      $region24: #{conv_block_forward.1} parent=11 // pred_fallthru
        _
      // Predicated region
      $region25: #{conv_block_forward.1} parent=11 // pred_check
        %p193 = pneg %p122
      $region26: #{conv_block_forward.1} parent=11 // pred_check_branch
        %195 = sbr.rel (%p193) target = $region28
      $region27: #{conv_block_forward.1} parent=11 // pred_region
        _
      $region28: #{conv_block_forward.1} parent=11 // pred_fallthru
        _
      // Predicated region
      $region29: #{conv_block_forward.1} parent=11 // pred_check
        %p196 = pneg %p143
      $region30: #{conv_block_forward.1} parent=11 // pred_check_branch
        %198 = sbr.rel (%p196) target = $region32
      $region31: #{conv_block_forward.1} parent=11 // pred_region
        _
      $region32: #{conv_block_forward.1} parent=11 // pred_fallthru
        _
    $region12: #{conv_block_forward.1} parent=5 // pred_fallthru
      _
    %p199 = scmp.lt.s32.totalorder %s12, 2
    // Predicated region
    $region33: #{conv_block_forward.1} parent=5 // pred_check
      %p200 = pneg %p199
    $region34: #{conv_block_forward.1} parent=5 // pred_check_branch
      %202 = sbr.rel (%p200) target = $region36
    $region35: #{conv_block_forward.1} parent=5 // pred_region
      // Predicated region
      $region37: #{conv_block_forward.1} parent=35 // pred_check
        %p203 = pneg %p32
      $region38: #{conv_block_forward.1} parent=35 // pred_check_branch
        %205 = sbr.rel (%p203) target = $region40
      $region39: #{conv_block_forward.1} parent=35 // pred_region
        %p206 = scmp.lt.s32.totalorder %s12, 1
        %s207 = scalar_select %p206, %s12, 1
        %s208 = smul.addr %s207, 2
        %s209 = smul.addr %s208, 8
        %s210 = scalar_lea.vmem %s0, %s209
      $region40: #{conv_block_forward.1} parent=35 // pred_fallthru
        _
    $region36: #{conv_block_forward.1} parent=5 // pred_fallthru
      _
    %p211 = scmp.le.s32.totalorder 1, %s12
    %p212 = scmp.lt.s32.totalorder %s12, 3
    %p213 = pnand %p211, %p212
    %p214 = pneg %p213
    // Predicated region
    $region41: #{conv_block_forward.1} parent=5 // pred_check
      _
    $region42: #{conv_block_forward.1} parent=5 // pred_check_branch
      %216 = sbr.rel (%p213) target = $region44
    $region43: #{conv_block_forward.1} parent=5 // pred_region
      %s217 = ssub.s32 %s12, 1
      %p218 = scmp.lt.s32.totalorder %s17, 1
      %s219 = scalar_select %p218, %s17, 1
      %s220 = smul.addr %s219, 2
      %s221 = smul.addr %s220, 8
      %s222 = scalar_lea.vmem %s0, %s221
      %p223 = pneg %p38
      %p224 = pneg %p35
      %p225 = pneg %p59
      %p226 = pneg %p56
      %p227 = pneg %p80
      %p228 = pneg %p77
      %p229 = pneg %p101
      %p230 = pneg %p98
      %p231 = pneg %p122
      %p232 = pneg %p119
      %p233 = pneg %p143
      %p234 = pneg %p140
      %p235 = pneg %p169
      %p236 = pneg %p166
      %p237 = scmp.lt.s32.totalorder %s17, 1
      %s238 = scalar_select %p237, %s17, 1
      %s239 = smul.addr %s238, 2
      %s240 = smul.addr %s239, 8
      %s241 = scalar_lea.vmem %s6, %s240
      %p242 = scmp.lt.s32.totalorder %s17, 1
      %s243 = scalar_select %p242, %s17, 1
      %s244 = smul.addr %s243, 2
      %s245 = smul.addr %s244, 8
      %s246 = scalar_lea.vmem %s0, %s245
      %p247 = scmp.lt.s32.totalorder %s17, 1
      %s248 = scalar_select %p247, %s17, 1
      %s249 = smul.addr %s248, 2
      %s250 = smul.addr %s249, 8
      %s251 = scalar_lea.vmem %s6, %s250
      %v253 = vld [vmem:[%s5] sm:$0xff]
      %v254 = vld [vmem:[%s5 + $0x8] sm:$0xff]
      %v255 = vld [vmem:[%s5 + $0x10] sm:$0x1]
      %v256 = vld [vmem:[%s5 + $0x18] sm:$0x1]
      %v257 = vld [vmem:[%s246] sm:$0xff]
      %v258 = vld [vmem:[%s246 + $0x8] sm:$0xff]
      %259 = vrot.lane.b32.xlu0 %v257, 17
      %v260 = vpop.permute.xlu0 %259
      %261 = vrot.lane.b32.xlu0 %v258, 17
      %v262 = vpop.permute.xlu0 %261
      %v263 = vlaneseq
      %v264 = vand.u32 %v263, 127
      %vm265 = vcmp.lt.s32.totalorder %v264, 17
      %v266 = vsel %vm265, %v260, %v262
      %v267 = vsel %vm265, %v262, %v260
      %v268 = vlaneseq
      %v269 = vshrl.u32 %v268, 7
      %v270 = vsub.s32 0, %v269
      %v271 = vrot.slane %v253, %v270
      %v272 = vlaneseq
      %v273 = vshrl.u32 %v272, 7
      %v274 = vsub.s32 0, %v273
      %v275 = vrot.slane %v254, %v274
      %v276 = vmul.f32 %v267, %v271
      %v277 = vmul.f32 %v266, %v275
      %v278 = vpack.c.bf16 %v276, %v276
      %v279 = vpack.c.bf16 %v277, %v277
      %v282 = vunpack.c.l.b16 %v278
      %v283 = vunpack.c.l.b16 %v279
      %v284 = vpack.c.b16 %v283, %v282
      %286 = vst [vmem:[#allocation2] sm:$0xff] %v284
      %287 = vrot.lane.b32.xlu0 %v257, 16
      %v288 = vpop.permute.xlu0 %287
      %289 = vrot.lane.b32.xlu0 %v258, 16
      %v290 = vpop.permute.xlu0 %289
      %vm291 = vcmp.lt.s32.totalorder %v264, 16
      %v292 = vsel %vm291, %v288, %v290
      %v293 = vsel %vm291, %v290, %v288
      %v294 = vlaneseq
      %v295 = vshrl.u32 %v294, 7
      %v296 = vsub.s32 1, %v295
      %v297 = vrot.slane %v253, %v296
      %v298 = vlaneseq
      %v299 = vshrl.u32 %v298, 7
      %v300 = vsub.s32 1, %v299
      %v301 = vrot.slane %v254, %v300
      %v302 = vmul.f32 %v293, %v297
      %v303 = vmul.f32 %v292, %v301
      %v304 = vpack.c.bf16 %v302, %v302
      %v305 = vpack.c.bf16 %v303, %v303
      %v308 = vunpack.c.l.b16 %v304
      %v309 = vunpack.c.l.b16 %v305
      %v310 = vpack.c.b16 %v309, %v308
      %312 = vst [vmem:[#allocation2 + $0x8] sm:$0xff] %v310
      %313 = vrot.lane.b32.xlu0 %v257, 15
      %v314 = vpop.permute.xlu0 %313
      %315 = vrot.lane.b32.xlu0 %v258, 15
      %v316 = vpop.permute.xlu0 %315
      %vm317 = vcmp.lt.s32.totalorder %v264, 15
      %v318 = vsel %vm317, %v314, %v316
      %v319 = vsel %vm317, %v316, %v314
      %v320 = vlaneseq
      %v321 = vshrl.u32 %v320, 7
      %v322 = vsub.s32 2, %v321
      %v323 = vrot.slane %v253, %v322
      %v324 = vlaneseq
      %v325 = vshrl.u32 %v324, 7
      %v326 = vsub.s32 2, %v325
      %v327 = vrot.slane %v254, %v326
      %v328 = vmul.f32 %v319, %v323
      %v329 = vmul.f32 %v318, %v327
      %v330 = vpack.c.bf16 %v328, %v328
      %v331 = vpack.c.bf16 %v329, %v329
      %v334 = vunpack.c.l.b16 %v330
      %v335 = vunpack.c.l.b16 %v331
      %v336 = vpack.c.b16 %v335, %v334
      %338 = vst [vmem:[#allocation2 + $0x10] sm:$0xff] %v336
      %339 = vrot.lane.b32.xlu0 %v257, 1
      %v340 = vpop.permute.xlu0 %339
      %341 = vrot.lane.b32.xlu0 %v258, 1
      %v342 = vpop.permute.xlu0 %341
      %vm343 = vcmp.lt.s32.totalorder %v264, 1
      %v344 = vsel %vm343, %v340, %v342
      %v345 = vsel %vm343, %v342, %v340
      %v346 = vlaneseq
      %v347 = vshrl.u32 %v346, 7
      %v348 = vsub.s32 3, %v347
      %v349 = vrot.slane %v253, %v348
      %v350 = vlaneseq
      %v351 = vshrl.u32 %v350, 7
      %v352 = vsub.s32 3, %v351
      %v353 = vrot.slane %v254, %v352
      %v354 = vmul.f32 %v345, %v349
      %v355 = vmul.f32 %v344, %v353
      %v356 = vpack.c.bf16 %v354, %v354
      %v357 = vpack.c.bf16 %v355, %v355
      %v360 = vunpack.c.l.b16 %v356
      %v361 = vunpack.c.l.b16 %v357
      %v362 = vpack.c.b16 %v361, %v360
      %364 = vst [vmem:[#allocation2 + $0x18] sm:$0xff] %v362
      %v365 = vlaneseq
      %v366 = vshrl.u32 %v365, 7
      %v367 = vsub.s32 4, %v366
      %v368 = vrot.slane %v253, %v367
      %v369 = vlaneseq
      %v370 = vshrl.u32 %v369, 7
      %v371 = vsub.s32 4, %v370
      %v372 = vrot.slane %v254, %v371
      %v373 = vmul.f32 %v257, %v368
      %v374 = vmul.f32 %v258, %v372
      %v375 = vpack.c.bf16 %v373, %v373
      %v376 = vpack.c.bf16 %v374, %v374
      %v379 = vunpack.c.l.b16 %v375
      %v380 = vunpack.c.l.b16 %v376
      %v381 = vpack.c.b16 %v380, %v379
      %383 = vst [vmem:[#allocation2 + $0x20] sm:$0xff] %v381
      %384 = vrot.lane.b32.xlu0 %v257, 127
      %v385 = vpop.permute.xlu0 %384
      %386 = vrot.lane.b32.xlu0 %v258, 127
      %v387 = vpop.permute.xlu0 %386
      %vm388 = vcmp.lt.s32.totalorder %v264, 127
      %v389 = vsel %vm388, %v385, %v387
      %v390 = vsel %vm388, %v387, %v385
      %v391 = vlaneseq
      %v392 = vshrl.u32 %v391, 7
      %v393 = vsub.s32 5, %v392
      %v394 = vrot.slane %v253, %v393
      %v395 = vlaneseq
      %v396 = vshrl.u32 %v395, 7
      %v397 = vsub.s32 5, %v396
      %v398 = vrot.slane %v254, %v397
      %v399 = vmul.f32 %v389, %v394
      %v400 = vmul.f32 %v390, %v398
      %v401 = vpack.c.bf16 %v399, %v399
      %v402 = vpack.c.bf16 %v400, %v400
      %v405 = vunpack.c.l.b16 %v401
      %v406 = vunpack.c.l.b16 %v402
      %v407 = vpack.c.b16 %v406, %v405
      %409 = vst [vmem:[#allocation2 + $0x28] sm:$0xff] %v407
      %410 = vrot.lane.b32.xlu0 %v257, 113
      %v411 = vpop.permute.xlu0 %410
      %412 = vrot.lane.b32.xlu0 %v258, 113
      %v413 = vpop.permute.xlu0 %412
      %vm414 = vcmp.lt.s32.totalorder %v264, 113
      %v415 = vsel %vm414, %v411, %v413
      %v416 = vsel %vm414, %v413, %v411
      %v417 = vlaneseq
      %v418 = vshrl.u32 %v417, 7
      %v419 = vsub.s32 6, %v418
      %v420 = vrot.slane %v253, %v419
      %v421 = vlaneseq
      %v422 = vshrl.u32 %v421, 7
      %v423 = vsub.s32 6, %v422
      %v424 = vrot.slane %v254, %v423
      %v425 = vmul.f32 %v415, %v420
      %v426 = vmul.f32 %v416, %v424
      %v427 = vpack.c.bf16 %v425, %v425
      %v428 = vpack.c.bf16 %v426, %v426
      %v431 = vunpack.c.l.b16 %v427
      %v432 = vunpack.c.l.b16 %v428
      %v433 = vpack.c.b16 %v432, %v431
      %435 = vst [vmem:[#allocation2 + $0x30] sm:$0xff] %v433
      %436 = vrot.lane.b32.xlu0 %v257, 112
      %v437 = vpop.permute.xlu0 %436
      %438 = vrot.lane.b32.xlu0 %v258, 112
      %v439 = vpop.permute.xlu0 %438
      %vm440 = vcmp.lt.s32.totalorder %v264, 112
      %v441 = vsel %vm440, %v437, %v439
      %v442 = vsel %vm440, %v439, %v437
      %v443 = vlaneseq
      %v444 = vshrl.u32 %v443, 7
      %v445 = vsub.s32 7, %v444
      %v446 = vrot.slane %v253, %v445
      %v447 = vlaneseq
      %v448 = vshrl.u32 %v447, 7
      %v449 = vsub.s32 7, %v448
      %v450 = vrot.slane %v254, %v449
      %v451 = vmul.f32 %v441, %v446
      %v452 = vmul.f32 %v442, %v450
      %v453 = vpack.c.bf16 %v451, %v451
      %v454 = vpack.c.bf16 %v452, %v452
      %v457 = vunpack.c.l.b16 %v453
      %v458 = vunpack.c.l.b16 %v454
      %v459 = vpack.c.b16 %v458, %v457
      %461 = vst [vmem:[#allocation2 + $0x38] sm:$0xff] %v459
      %462 = vrot.lane.b32.xlu0 %v257, 111
      %v463 = vpop.permute.xlu0 %462
      %464 = vrot.lane.b32.xlu0 %v258, 111
      %v465 = vpop.permute.xlu0 %464
      %vm466 = vcmp.lt.s32.totalorder %v264, 111
      %v467 = vsel %vm466, %v463, %v465
      %v468 = vsel %vm466, %v465, %v463
      %v469 = vlaneseq
      %v470 = vshrl.u32 %v469, 7
      %v471 = vsub.s32 0, %v470
      %v472 = vrot.slane %v255, %v471
      %v473 = vlaneseq
      %v474 = vshrl.u32 %v473, 7
      %v475 = vsub.s32 0, %v474
      %v476 = vrot.slane %v256, %v475
      %v477 = vmul.f32 %v467, %v472
      %v478 = vmul.f32 %v468, %v476
      %v479 = vpack.c.bf16 %v477, %v477
      %v480 = vpack.c.bf16 %v478, %v478
      %v483 = vunpack.c.l.b16 %v479
      %v484 = vunpack.c.l.b16 %v480
      %v485 = vpack.c.b16 %v484, %v483
      %487 = vst [vmem:[#allocation2 + $0x40] sm:$0xff] %v485
      %v488 = vld [vmem:[%s1] sm:$0xf]
      %v489 = vld [vmem:[#allocation2] sm:$0xff]
      %v490 = vld [vmem:[#allocation2 + $0x8] sm:$0xff]
      %v491 = vld [vmem:[#allocation2 + $0x10] sm:$0xff]
      %v492 = vld [vmem:[#allocation2 + $0x18] sm:$0xff]
      %v493 = vld [vmem:[#allocation2 + $0x20] sm:$0xff]
      %v494 = vld [vmem:[#allocation2 + $0x28] sm:$0xff]
      %v495 = vld [vmem:[#allocation2 + $0x30] sm:$0xff]
      %v496 = vld [vmem:[#allocation2 + $0x38] sm:$0xff]
      %v497 = vld [vmem:[#allocation2 + $0x40] sm:$0xff]
      %v498 = vld [vmem:[%s2] sm:$0xff]
      %500 = vset.pattern.permute.xlu0 0
      %501 = vperm.xlu0 %500, %v498
      %v502 = vpop.permute.xlu0 %501
      %v513 = vunpack.c.l.b16 %v489
      %v514 = vunpack.c.h.b16 %v489
      %v515 = vunpack.c.l.b16 %v490
      %v516 = vunpack.c.h.b16 %v490
      %v517 = vunpack.c.l.b16 %v491
      %v518 = vunpack.c.h.b16 %v491
      %v519 = vunpack.c.l.b16 %v492
      %v520 = vunpack.c.h.b16 %v492
      %v521 = vunpack.c.l.b16 %v493
      %v522 = vunpack.c.h.b16 %v493
      %v523 = vunpack.c.l.b16 %v494
      %v524 = vunpack.c.h.b16 %v494
      %v525 = vunpack.c.l.b16 %v495
      %v526 = vunpack.c.h.b16 %v495
      %v527 = vunpack.c.l.b16 %v496
      %v528 = vunpack.c.h.b16 %v496
      %v529 = vunpack.c.l.b16 %v497
      %v530 = vunpack.c.h.b16 %v497
      %v531 = vpack.c.b16 %v515, %v513
      %v532 = vpack.c.b16 %v516, %v514
      %v533 = vpack.c.b16 %v519, %v517
      %v534 = vpack.c.b16 %v520, %v518
      %v535 = vpack.c.b16 %v523, %v521
      %v536 = vpack.c.b16 %v524, %v522
      %v537 = vpack.c.b16 %v527, %v525
      %v538 = vpack.c.b16 %v528, %v526
      %v539 = vpack.c.b16 %v529, %v529
      %v540 = vpack.c.b16 %v530, %v530
      %vm549 = vcmask 588800
      %v551 = vsel %vm549, %v488, 0
      %vm553 = vcmask 1043456
      %v555 = vsel %vm553, %v539, 0
      %v558 = vsel %vm553, %v540, 0
      %560 = vmatprep.subr.bf16.mxu0 0
      %561 = vmatpush1.bf16.msra.mxu0 0
      %562 = vmatprep.subr.bf16.mxu0 0
      %563 = vmatpush1.bf16.msra.mxu0 0
      %564 = vmatprep.subr.bf16.mxu0 0
      %565 = vmatpush1.bf16.msra.mxu0 0
      %566 = vmatprep.subr.bf16.mxu0 %v558
      %567 = vmatpush1.bf16.msra.mxu0 %v555
      %568 = vmatprep.subr.bf16.mxu0 %v538
      %569 = vmatpush1.bf16.msra.mxu0 %v537
      %570 = vmatprep.subr.bf16.mxu0 %v536
      %571 = vmatpush1.bf16.msra.mxu0 %v535
      %572 = vmatprep.subr.bf16.mxu0 %v534
      %573 = vmatpush1.bf16.msra.mxu0 %v533
      %574 = vmatprep.subr.bf16.mxu0 %v532
      %575 = vmatpush1.bf16.msra.mxu0 %v531
      %576 = vmatprep.subr.bf16.mxu0 0
      %577 = vmatpush2.bf16.msra.mxu0 0
      %578 = vmatprep.subr.bf16.mxu0 0
      %579 = vmatpush2.bf16.msra.mxu0 0
      %580 = vmatprep.subr.bf16.mxu0 0
      %581 = vmatpush2.bf16.msra.mxu0 0
      %582 = vmatprep.subr.bf16.mxu0 0
      %583 = vmatpush2.bf16.msra.mxu0 0
      %584 = vmatprep.subr.bf16.mxu0 0
      %585 = vmatpush2.bf16.msra.mxu0 0
      %586 = vmatprep.subr.bf16.mxu0 0
      %587 = vmatpush2.bf16.msra.mxu0 0
      %588 = vmatprep.subr.bf16.mxu0 0
      %589 = vmatpush2.bf16.msra.mxu0 0
      %590 = vmatprep.subr.bf16.mxu0 0
      %591 = vmatpush2.bf16.msra.mxu0 0
      %592 = vmatprep.mubr.bf16.mxu0 0
      %593 = vmatmul.mubr.bf16.gmra.mxu0 %v551
      %v594 = vpop.f32.mrf.mxu0
      %v595 = vadd.f32 %v502, %v594
      %v596 = vpop.f32.mrf.mxu0
      %v597 = vadd.f32 %v502, %v596
      %v598 = vpop.f32.mrf.mxu0
      %v599 = vpop.f32.mrf.mxu0
      %600 = vdwg.mxu0
      %v601 = vmax.f32 %v595, 0.0
      %v602 = vmax.f32 %v597, 0.0
      %603 = vrot.lane.b32.xlu0 %v601, 17
      %v604 = vpop.permute.xlu0 %603
      %605 = vrot.lane.b32.xlu0 %v602, 17
      %v606 = vpop.permute.xlu0 %605
      %v607 = vsel %vm265, %v604, %v606
      %v608 = vsel %vm265, %v606, %v604
      %v609 = vmul.f32 %v608, %v271
      %v610 = vmul.f32 %v607, %v275
      %v611 = vpack.c.bf16 %v609, %v609
      %v612 = vpack.c.bf16 %v610, %v610
      %v615 = vunpack.c.l.b16 %v611
      %v616 = vunpack.c.l.b16 %v612
      %v617 = vpack.c.b16 %v616, %v615
      %619 = vst [vmem:[#allocation3] sm:$0xff] %v617
      %620 = vrot.lane.b32.xlu0 %v601, 16
      %v621 = vpop.permute.xlu0 %620
      %622 = vrot.lane.b32.xlu0 %v602, 16
      %v623 = vpop.permute.xlu0 %622
      %v624 = vsel %vm291, %v621, %v623
      %v625 = vsel %vm291, %v623, %v621
      %v626 = vmul.f32 %v625, %v297
      %v627 = vmul.f32 %v624, %v301
      %v628 = vpack.c.bf16 %v626, %v626
      %v629 = vpack.c.bf16 %v627, %v627
      %v632 = vunpack.c.l.b16 %v628
      %v633 = vunpack.c.l.b16 %v629
      %v634 = vpack.c.b16 %v633, %v632
      %636 = vst [vmem:[#allocation3 + $0x8] sm:$0xff] %v634
      %637 = vrot.lane.b32.xlu0 %v601, 15
      %v638 = vpop.permute.xlu0 %637
      %639 = vrot.lane.b32.xlu0 %v602, 15
      %v640 = vpop.permute.xlu0 %639
      %v641 = vsel %vm317, %v638, %v640
      %v642 = vsel %vm317, %v640, %v638
      %v643 = vmul.f32 %v642, %v323
      %v644 = vmul.f32 %v641, %v327
      %v645 = vpack.c.bf16 %v643, %v643
      %v646 = vpack.c.bf16 %v644, %v644
      %v649 = vunpack.c.l.b16 %v645
      %v650 = vunpack.c.l.b16 %v646
      %v651 = vpack.c.b16 %v650, %v649
      %653 = vst [vmem:[#allocation3 + $0x10] sm:$0xff] %v651
      %654 = vrot.lane.b32.xlu0 %v601, 1
      %v655 = vpop.permute.xlu0 %654
      %656 = vrot.lane.b32.xlu0 %v602, 1
      %v657 = vpop.permute.xlu0 %656
      %v658 = vsel %vm343, %v655, %v657
      %v659 = vsel %vm343, %v657, %v655
      %v660 = vmul.f32 %v659, %v349
      %v661 = vmul.f32 %v658, %v353
      %v662 = vpack.c.bf16 %v660, %v660
      %v663 = vpack.c.bf16 %v661, %v661
      %v666 = vunpack.c.l.b16 %v662
      %v667 = vunpack.c.l.b16 %v663
      %v668 = vpack.c.b16 %v667, %v666
      %670 = vst [vmem:[#allocation3 + $0x18] sm:$0xff] %v668
      %v671 = vmul.f32 %v601, %v368
      %v672 = vmul.f32 %v602, %v372
      %v673 = vpack.c.bf16 %v671, %v671
      %v674 = vpack.c.bf16 %v672, %v672
      %v677 = vunpack.c.l.b16 %v673
      %v678 = vunpack.c.l.b16 %v674
      %v679 = vpack.c.b16 %v678, %v677
      %681 = vst [vmem:[#allocation3 + $0x20] sm:$0xff] %v679
      %682 = vrot.lane.b32.xlu0 %v601, 127
      %v683 = vpop.permute.xlu0 %682
      %684 = vrot.lane.b32.xlu0 %v602, 127
      %v685 = vpop.permute.xlu0 %684
      %v686 = vsel %vm388, %v683, %v685
      %v687 = vsel %vm388, %v685, %v683
      %v688 = vmul.f32 %v686, %v394
      %v689 = vmul.f32 %v687, %v398
      %v690 = vpack.c.bf16 %v688, %v688
      %v691 = vpack.c.bf16 %v689, %v689
      %v694 = vunpack.c.l.b16 %v690
      %v695 = vunpack.c.l.b16 %v691
      %v696 = vpack.c.b16 %v695, %v694
      %698 = vst [vmem:[#allocation3 + $0x28] sm:$0xff] %v696
      %699 = vrot.lane.b32.xlu0 %v601, 113
      %v700 = vpop.permute.xlu0 %699
      %701 = vrot.lane.b32.xlu0 %v602, 113
      %v702 = vpop.permute.xlu0 %701
      %v703 = vsel %vm414, %v700, %v702
      %v704 = vsel %vm414, %v702, %v700
      %v705 = vmul.f32 %v703, %v420
      %v706 = vmul.f32 %v704, %v424
      %v707 = vpack.c.bf16 %v705, %v705
      %v708 = vpack.c.bf16 %v706, %v706
      %v711 = vunpack.c.l.b16 %v707
      %v712 = vunpack.c.l.b16 %v708
      %v713 = vpack.c.b16 %v712, %v711
      %715 = vst [vmem:[#allocation3 + $0x30] sm:$0xff] %v713
      %716 = vrot.lane.b32.xlu0 %v601, 112
      %v717 = vpop.permute.xlu0 %716
      %718 = vrot.lane.b32.xlu0 %v602, 112
      %v719 = vpop.permute.xlu0 %718
      %v720 = vsel %vm440, %v717, %v719
      %v721 = vsel %vm440, %v719, %v717
      %v722 = vmul.f32 %v720, %v446
      %v723 = vmul.f32 %v721, %v450
      %v724 = vpack.c.bf16 %v722, %v722
      %v725 = vpack.c.bf16 %v723, %v723
      %v728 = vunpack.c.l.b16 %v724
      %v729 = vunpack.c.l.b16 %v725
      %v730 = vpack.c.b16 %v729, %v728
      %732 = vst [vmem:[#allocation3 + $0x38] sm:$0xff] %v730
      %733 = vrot.lane.b32.xlu0 %v601, 111
      %v734 = vpop.permute.xlu0 %733
      %735 = vrot.lane.b32.xlu0 %v602, 111
      %v736 = vpop.permute.xlu0 %735
      %v737 = vsel %vm466, %v734, %v736
      %v738 = vsel %vm466, %v736, %v734
      %v739 = vmul.f32 %v737, %v472
      %v740 = vmul.f32 %v738, %v476
      %v741 = vpack.c.bf16 %v739, %v739
      %v742 = vpack.c.bf16 %v740, %v740
      %v745 = vunpack.c.l.b16 %v741
      %v746 = vunpack.c.l.b16 %v742
      %v747 = vpack.c.b16 %v746, %v745
      %749 = vst [vmem:[#allocation3 + $0x40] sm:$0xff] %v747
      %v750 = vld [vmem:[%s3] sm:$0xf]
      %v751 = vld [vmem:[#allocation3] sm:$0xff]
      %v752 = vld [vmem:[#allocation3 + $0x8] sm:$0xff]
      %v753 = vld [vmem:[#allocation3 + $0x10] sm:$0xff]
      %v754 = vld [vmem:[#allocation3 + $0x18] sm:$0xff]
      %v755 = vld [vmem:[#allocation3 + $0x20] sm:$0xff]
      %v756 = vld [vmem:[#allocation3 + $0x28] sm:$0xff]
      %v757 = vld [vmem:[#allocation3 + $0x30] sm:$0xff]
      %v758 = vld [vmem:[#allocation3 + $0x38] sm:$0xff]
      %v759 = vld [vmem:[#allocation3 + $0x40] sm:$0xff]
      %v760 = vld [vmem:[%s4] sm:$0xff]
      %762 = vset.pattern.permute.xlu0 0
      %763 = vperm.xlu0 %762, %v760
      %v764 = vpop.permute.xlu0 %763
      %v775 = vunpack.c.l.b16 %v751
      %v776 = vunpack.c.h.b16 %v751
      %v777 = vunpack.c.l.b16 %v752
      %v778 = vunpack.c.h.b16 %v752
      %v779 = vunpack.c.l.b16 %v753
      %v780 = vunpack.c.h.b16 %v753
      %v781 = vunpack.c.l.b16 %v754
      %v782 = vunpack.c.h.b16 %v754
      %v783 = vunpack.c.l.b16 %v755
      %v784 = vunpack.c.h.b16 %v755
      %v785 = vunpack.c.l.b16 %v756
      %v786 = vunpack.c.h.b16 %v756
      %v787 = vunpack.c.l.b16 %v757
      %v788 = vunpack.c.h.b16 %v757
      %v789 = vunpack.c.l.b16 %v758
      %v790 = vunpack.c.h.b16 %v758
      %v791 = vunpack.c.l.b16 %v759
      %v792 = vunpack.c.h.b16 %v759
      %v793 = vpack.c.b16 %v777, %v775
      %v794 = vpack.c.b16 %v778, %v776
      %v795 = vpack.c.b16 %v781, %v779
      %v796 = vpack.c.b16 %v782, %v780
      %v797 = vpack.c.b16 %v785, %v783
      %v798 = vpack.c.b16 %v786, %v784
      %v799 = vpack.c.b16 %v789, %v787
      %v800 = vpack.c.b16 %v790, %v788
      %v801 = vpack.c.b16 %v791, %v791
      %v802 = vpack.c.b16 %v792, %v792
      %v812 = vsel %vm549, %v750, 0
      %v815 = vsel %vm553, %v801, 0
      %v818 = vsel %vm553, %v802, 0
      %820 = vmatprep.subr.bf16.mxu0 0
      %821 = vmatpush1.bf16.msra.mxu0 0
      %822 = vmatprep.subr.bf16.mxu0 0
      %823 = vmatpush1.bf16.msra.mxu0 0
      %824 = vmatprep.subr.bf16.mxu0 0
      %825 = vmatpush1.bf16.msra.mxu0 0
      %826 = vmatprep.subr.bf16.mxu0 %v818
      %827 = vmatpush1.bf16.msra.mxu0 %v815
      %828 = vmatprep.subr.bf16.mxu0 %v800
      %829 = vmatpush1.bf16.msra.mxu0 %v799
      %830 = vmatprep.subr.bf16.mxu0 %v798
      %831 = vmatpush1.bf16.msra.mxu0 %v797
      %832 = vmatprep.subr.bf16.mxu0 %v796
      %833 = vmatpush1.bf16.msra.mxu0 %v795
      %834 = vmatprep.subr.bf16.mxu0 %v794
      %835 = vmatpush1.bf16.msra.mxu0 %v793
      %836 = vmatprep.subr.bf16.mxu0 0
      %837 = vmatpush2.bf16.msra.mxu0 0
      %838 = vmatprep.subr.bf16.mxu0 0
      %839 = vmatpush2.bf16.msra.mxu0 0
      %840 = vmatprep.subr.bf16.mxu0 0
      %841 = vmatpush2.bf16.msra.mxu0 0
      %842 = vmatprep.subr.bf16.mxu0 0
      %843 = vmatpush2.bf16.msra.mxu0 0
      %844 = vmatprep.subr.bf16.mxu0 0
      %845 = vmatpush2.bf16.msra.mxu0 0
      %846 = vmatprep.subr.bf16.mxu0 0
      %847 = vmatpush2.bf16.msra.mxu0 0
      %848 = vmatprep.subr.bf16.mxu0 0
      %849 = vmatpush2.bf16.msra.mxu0 0
      %850 = vmatprep.subr.bf16.mxu0 0
      %851 = vmatpush2.bf16.msra.mxu0 0
      %852 = vmatprep.mubr.bf16.mxu0 0
      %853 = vmatmul.mubr.bf16.gmra.mxu0 %v812
      %v854 = vpop.f32.mrf.mxu0
      %v855 = vadd.f32 %v764, %v854
      %v856 = vpop.f32.mrf.mxu0
      %v857 = vadd.f32 %v764, %v856
      %v858 = vpop.f32.mrf.mxu0
      %v859 = vpop.f32.mrf.mxu0
      %860 = vdwg.mxu0
      %v861 = vmax.f32 %v855, 0.0
      %v862 = vmax.f32 %v857, 0.0
      %863 = vst [vmem:[%s251] sm:$0xff] %v861
      %864 = vst [vmem:[%s251 + $0x8] sm:$0xff] %v862
      %p865 = scmp.lt.s32.totalorder %s17, 1
      %s866 = scalar_select %p865, %s17, 1
      %s867 = smul.addr %s866, 2
      %s868 = smul.addr %s867, 8
      %s869 = scalar_lea.vmem %s6, %s868
      // Predicated region
      $region45: #{conv_block_forward.1} parent=43 // pred_check
        %p870 = pneg %p166
      $region46: #{conv_block_forward.1} parent=43 // pred_check_branch
        %872 = sbr.rel (%p870) target = $region48
      $region47: #{conv_block_forward.1} parent=43 // pred_region
        _
      $region48: #{conv_block_forward.1} parent=43 // pred_fallthru
        _
    $region44: #{conv_block_forward.1} parent=5 // pred_fallthru
      _
    %p873 = scmp.le.s32.totalorder 2, %s12
    // Predicated region
    $region49: #{conv_block_forward.1} parent=5 // pred_check
      %p874 = pneg %p873
    $region50: #{conv_block_forward.1} parent=5 // pred_check_branch
      %876 = sbr.rel (%p874) target = $region52
    $region51: #{conv_block_forward.1} parent=5 // pred_region
      %s877 = ssub.s32 %s12, 2
      // Predicated region
      $region53: #{conv_block_forward.1} parent=51 // pred_check
        %p878 = pneg %p172
      $region54: #{conv_block_forward.1} parent=51 // pred_check_branch
        %880 = sbr.rel (%p878) target = $region56
      $region55: #{conv_block_forward.1} parent=51 // pred_region
        %p881 = scmp.lt.s32.totalorder %s18, 1
        %s882 = scalar_select %p881, %s18, 1
        %s883 = smul.addr %s882, 2
        %s884 = smul.addr %s883, 8
        %s885 = scalar_lea.vmem %s6, %s884
      $region56: #{conv_block_forward.1} parent=51 // pred_fallthru
        _
    $region52: #{conv_block_forward.1} parent=5 // pred_fallthru
      _
  $region6: #{conv_block_forward.1} parent=0 // loop_footer
    %s16 = sadd.s32 1, %s12
  $region7: #{conv_block_forward.1} parent=0 // loop_footer_branch
    %11 = sbr.rel target = $region3
  $region8: #{conv_block_forward.1} parent=0 // loop_exit
    _

</llo_original>
